<compile_context>
chip_gen: v7x
topology: tpu7x:2x2x1
jax: 0.10.0
libtpu: 0.0.40
codegen_flags: <defaults>
</compile_context>

<pallas_src>
import functools

import jax
import jax.numpy as jnp
from jax.experimental import pallas as pl
from jax.experimental.pallas import tpu as pltpu


def _round_up(n, m):
    return pl.cdiv(n, m) * m


# ---------------------------------------------------------------------------
# Kernel: one (tm, H) row tile x one (tf,) slice of the ffn dim.
#   h_j   = act(x @ W1[:, j] + b1[j])            (tm, tf)
#   acc  += h_j @ W2[j, :]                       (tm, H)   -- reduction over j
#   o     = acc + b2        (on the last f-step)
# ---------------------------------------------------------------------------
def ffn_kernel(x_ref, w1_ref, b1_ref, w2_ref, b2_ref, o_ref, acc_ref, *,
               activation):
    j = pl.program_id(1)

    @pl.when(j == 0)
    def _init():
        acc_ref[...] = jnp.zeros_like(acc_ref)

    x = x_ref[...]                                                  # (tm, H)
    h = jnp.dot(x.astype(w1_ref.dtype), w1_ref[...],
                preferred_element_type=jnp.float32)                 # (tm, tf)
    h = h + b1_ref[...]
    if activation == "relu":
        h = jnp.maximum(h, 0.0)
    elif activation == "silu":
        h = h * jax.nn.sigmoid(h)
    else:
        # TODO(synk): torch nn.GELU() is exact-erf; tanh approximation used
        # for robust Mosaic/EUP lowering (max abs diff ~1e-3).
        h = jax.nn.gelu(h, approximate=True)

    acc_ref[...] += jnp.dot(h.astype(w2_ref.dtype), w2_ref[...],
                            preferred_element_type=jnp.float32)     # (tm, H)

    @pl.when(j == pl.num_programs(1) - 1)
    def _finalize():
        o_ref[...] = (acc_ref[...] + b2_ref[...]).astype(o_ref.dtype)


# ---------------------------------------------------------------------------
# Wrapper: flatten (..., H) -> (M, H), pad to lane/sublane multiples, tile,
# pipeline, unpad, unflatten.  Weights are stored already transposed (in, out):
#   w1: (H, F), b1: (1, F), w2: (F, H), b2: (1, H)
# Pass bf16 w1/w2 on v6e/v7x for the bf16 MXU path; f32 works everywhere.
# ---------------------------------------------------------------------------
@functools.partial(jax.jit, static_argnames=("activation", "tm"))
def feed_forward(x, w1, b1, w2, b2, *, activation="gelu", tm=256):
    orig_shape = x.shape
    H = orig_shape[-1]
    F = w1.shape[1]
    x2d = x.reshape(-1, H)
    M = x2d.shape[0]

    bpe_x = x.dtype.itemsize
    bpe_w = w1.dtype.itemsize

    # Lane-dense feature dims (exact: zero padding contributes zero).
    H_pad = _round_up(H, 128)
    F_pad = _round_up(F, 128)

    # Row tile: tm (MXU friendly) for big M, else one sublane-aligned block.
    tile_m = min(tm, _round_up(M, 8))
    m_pad = _round_up(M, tile_m)

    # ffn-dim tile: keep per-step VMEM footprint under ~24 MiB (double
    # buffered inputs/outputs + f32 accumulator + hidden activation).
    def footprint(tf):
        return (4 * tile_m * H_pad * bpe_x            # x tile + out tile, 2-buf
                + 4 * H_pad * tf * bpe_w              # w1 + w2 tiles, 2-buf
                + tile_m * H_pad * 4                  # f32 accumulator
                + tile_m * tf * 4)                    # hidden activation

    budget = 24 << 20
    tile_f = F_pad
    if footprint(tile_f) > budget:
        for cand in (2048, 1024, 512, 256, 128):
            if F_pad % cand == 0:
                tile_f = cand
                if footprint(cand) <= budget:
                    break

    # Zero-pad operands (no-ops when already aligned).
    if (m_pad, H_pad) != (M, H):
        x2d = jnp.pad(x2d, ((0, m_pad - M), (0, H_pad - H)))
    if H_pad != H or F_pad != F:
        w1 = jnp.pad(w1, ((0, H_pad - H), (0, F_pad - F)))
        w2 = jnp.pad(w2, ((0, F_pad - F), (0, H_pad - H)))
        b1 = jnp.pad(b1, ((0, 0), (0, F_pad - F)))
        b2 = jnp.pad(b2, ((0, 0), (0, H_pad - H)))

    grid = (m_pad // tile_m, F_pad // tile_f)

    cost = pl.CostEstimate(
        flops=4 * m_pad * H_pad * F_pad,                    # two matmuls
        transcendentals=m_pad * F_pad,                      # activation
        bytes_accessed=(2 * m_pad * H_pad * bpe_x           # x in, y out
                        + grid[0] * 2 * H_pad * F_pad * bpe_w  # streamed W1,W2
                        + (F_pad + H_pad) * 4),             # biases
    )

    kernel = functools.partial(ffn_kernel, activation=activation)
    out2d = pl.pallas_call(
        kernel,
        out_shape=jax.ShapeDtypeStruct((m_pad, H_pad), x.dtype),
        grid_spec=pltpu.PrefetchScalarGridSpec(
            num_scalar_prefetch=0,
            grid=grid,
            in_specs=[
                pl.BlockSpec((tile_m, H_pad), lambda i, j: (i, 0)),   # x tile
                pl.BlockSpec((H_pad, tile_f), lambda i, j: (0, j)),   # W1 tile
                pl.BlockSpec((1, tile_f), lambda i, j: (0, j)),       # b1 tile
                pl.BlockSpec((tile_f, H_pad), lambda i, j: (j, 0)),   # W2 tile
                pl.BlockSpec((1, H_pad), lambda i, j: (0, 0)),        # b2
            ],
            out_specs=pl.BlockSpec((tile_m, H_pad), lambda i, j: (i, 0)),
            scratch_shapes=[pltpu.VMEM((tile_m, H_pad), jnp.float32)],
        ),
        compiler_params=pltpu.CompilerParams(
            dimension_semantics=("parallel", "arbitrary")),           # rows || , F reduce
        cost_estimate=cost,
    )(x2d, w1, b1, w2, b2)

    out2d = out2d[:M, :H]
    return out2d.reshape(orig_shape)


# ---------------------------------------------------------------------------
# Deterministic parameter construction mirroring nn.Linear defaults
# (kaiming-uniform weights, uniform biases), stored transposed as (in, out).
# ---------------------------------------------------------------------------
def init_ffn_params(key, hidden_dim, ffn_dim):
    k1, k2, k3, k4 = jax.random.split(key, 4)
    bound1 = 1.0 / jnp.sqrt(hidden_dim)
    bound2 = 1.0 / jnp.sqrt(ffn_dim)
    w1 = jax.random.uniform(k1, (hidden_dim, ffn_dim), jnp.float32,
                            -bound1, bound1)
    b1 = jax.random.uniform(k2, (1, ffn_dim), jnp.float32, -bound1, bound1)
    w2 = jax.random.uniform(k3, (ffn_dim, hidden_dim), jnp.float32,
                            -bound2, bound2)
    b2 = jax.random.uniform(k4, (1, hidden_dim), jnp.float32, -bound2, bound2)
    return w1, b1, w2, b2


def ffn_reference(x, w1, b1, w2, b2):
    h = jnp.dot(x, w1) + b1
    h = jax.nn.gelu(h, approximate=True)
    return jnp.dot(h, w2) + b2


if __name__ == "__main__":
    B, S, H, F = 2, 8, 32, 64   # batch, seq, hidden_dim, ffn_dim

    key = jax.random.PRNGKey(0)
    pkey, dkey = jax.random.split(key)
    w1, b1, w2, b2 = init_ffn_params(pkey, H, F)
    x = jax.random.normal(dkey, (B, S, H), jnp.float32)

    out = feed_forward(x, w1, b1, w2, b2, activation="gelu")
    out = jax.block_until_ready(out)

    assert out.shape == (B, S, H)
    assert bool(jnp.all(jnp.isfinite(out)))
    ref = ffn_reference(x.reshape(-1, H), w1, b1, w2, b2).reshape(B, S, H)
    assert bool(jnp.max(jnp.abs(out - ref)) < 1e-4)
    print("KERNEL_OK")
</pallas_src>

<mosaic_0001>
module attributes {stable_mosaic.version = 11 : i64} {
  func.func @ffn_kernel(%arg0: i32, %arg1: i32, %arg2: memref<16x128xf32, #tpu.memory_space<vmem>>, %arg3: memref<128x128xf32, #tpu.memory_space<vmem>>, %arg4: memref<1x128xf32, #tpu.memory_space<vmem>>, %arg5: memref<128x128xf32, #tpu.memory_space<vmem>>, %arg6: memref<1x128xf32, #tpu.memory_space<vmem>>, %arg7: memref<16x128xf32, #tpu.memory_space<vmem>>, %arg8: memref<16x128xf32, #tpu.memory_space<vmem>>) attributes {dimension_semantics = [#tpu.dimension_semantics<parallel>, #tpu.dimension_semantics<arbitrary>], iteration_bounds = array<i64: 1, 1>, scalar_prefetch = 0 : i64, scratch_operands = 1 : i64, tpu.core_type = #tpu.core_type<tc>, window_params = [{transform_indices = @transform_0, window_bounds = array<i64: 16, 128>}, {transform_indices = @transform_1, window_bounds = array<i64: 128, 128>}, {transform_indices = @transform_2, window_bounds = array<i64: 1, 128>}, {transform_indices = @transform_3, window_bounds = array<i64: 128, 128>}, {pipeline_mode = #tpu.pipeline_mode<synchronous>, transform_indices = @transform_4, window_bounds = array<i64: 1, 128>}, {transform_indices = @transform_5, window_bounds = array<i64: 16, 128>}]} {
    %c0_i32 = arith.constant 0 : i32
    %0 = arith.cmpi eq, %arg1, %c0_i32 : i32
    %1 = arith.extui %0 : i1 to i32
    %c0_i32_0 = arith.constant 0 : i32
    %2 = arith.cmpi ne, %1, %c0_i32_0 : i32
    scf.if %2 {
      %cst_19 = arith.constant 0.000000e+00 : f32
      %30 = vector.broadcast %cst_19 : f32 to vector<16x128xf32>
      %c0_20 = arith.constant 0 : index
      %c0_21 = arith.constant 0 : index
      %31 = vector.load %arg8[%c0_20, %c0_21] : memref<16x128xf32, #tpu.memory_space<vmem>>, vector<16x128xf32>
      tpu.vector_store %arg8[%c0_20, %c0_21], %30 {strides = array<i32>} : memref<16x128xf32, #tpu.memory_space<vmem>>, vector<16x128xf32>,
    } else {
    }
    %c0 = arith.constant 0 : index
    %c0_1 = arith.constant 0 : index
    %3 = vector.load %arg2[%c0, %c0_1] : memref<16x128xf32, #tpu.memory_space<vmem>>, vector<16x128xf32>
    %c0_2 = arith.constant 0 : index
    %c0_3 = arith.constant 0 : index
    %4 = vector.load %arg3[%c0_2, %c0_3] : memref<128x128xf32, #tpu.memory_space<vmem>>, vector<128x128xf32>
    %cst = arith.constant dense<0.000000e+00> : vector<16x128xf32>
    %5 = tpu.matmul %3, %4, %cst {dimension_numbers = #tpu.dot_dimension_numbers<[1], [0], [0], [1], [0, 0, 1, 1], [], []>} : vector<16x128xf32>, vector<128x128xf32>, vector<16x128xf32> -> vector<16x128xf32>
    %c0_4 = arith.constant 0 : index
    %c0_5 = arith.constant 0 : index
    %6 = vector.load %arg4[%c0_4, %c0_5] : memref<1x128xf32, #tpu.memory_space<vmem>>, vector<1x128xf32>
    %7 = vector.broadcast %6 : vector<1x128xf32> to vector<16x128xf32>
    %8 = arith.addf %5, %7 : vector<16x128xf32>
    %9 = arith.mulf %8, %8 : vector<16x128xf32>
    %10 = arith.mulf %8, %9 : vector<16x128xf32>
    %cst_6 = arith.constant 4.471500e-02 : f32
    %11 = vector.broadcast %cst_6 : f32 to vector<16x128xf32>
    %12 = arith.mulf %11, %10 : vector<16x128xf32>
    %13 = arith.addf %8, %12 : vector<16x128xf32>
    %cst_7 = arith.constant 0.797884583 : f32
    %14 = vector.broadcast %cst_7 : f32 to vector<16x128xf32>
    %15 = arith.mulf %14, %13 : vector<16x128xf32>
    %16 = math.tanh %15 : vector<16x128xf32>
    %cst_8 = arith.constant 1.000000e+00 : f32
    %17 = vector.broadcast %cst_8 : f32 to vector<16x128xf32>
    %18 = arith.addf %17, %16 : vector<16x128xf32>
    %cst_9 = arith.constant 5.000000e-01 : f32
    %19 = vector.broadcast %cst_9 : f32 to vector<16x128xf32>
    %20 = arith.mulf %19, %18 : vector<16x128xf32>
    %21 = arith.mulf %8, %20 : vector<16x128xf32>
    %c0_10 = arith.constant 0 : index
    %c0_11 = arith.constant 0 : index
    %22 = vector.load %arg8[%c0_10, %c0_11] : memref<16x128xf32, #tpu.memory_space<vmem>>, vector<16x128xf32>
    %c0_12 = arith.constant 0 : index
    %c0_13 = arith.constant 0 : index
    %23 = vector.load %arg5[%c0_12, %c0_13] : memref<128x128xf32, #tpu.memory_space<vmem>>, vector<128x128xf32>
    %cst_14 = arith.constant dense<0.000000e+00> : vector<16x128xf32>
    %24 = tpu.matmul %21, %23, %cst_14 {dimension_numbers = #tpu.dot_dimension_numbers<[1], [0], [0], [1], [0, 0, 1, 1], [], []>} : vector<16x128xf32>, vector<128x128xf32>, vector<16x128xf32> -> vector<16x128xf32>
    %25 = arith.addf %22, %24 : vector<16x128xf32>
    %c0_15 = arith.constant 0 : index
    %c0_16 = arith.constant 0 : index
    %26 = vector.load %arg8[%c0_15, %c0_16] : memref<16x128xf32, #tpu.memory_space<vmem>>, vector<16x128xf32>
    tpu.vector_store %arg8[%c0_15, %c0_16], %25 {strides = array<i32>} : memref<16x128xf32, #tpu.memory_space<vmem>>, vector<16x128xf32>,
    %c0_i32_17 = arith.constant 0 : i32
    %27 = arith.cmpi eq, %arg1, %c0_i32_17 : i32
    %28 = arith.extui %27 : i1 to i32
    %c0_i32_18 = arith.constant 0 : i32
    %29 = arith.cmpi ne, %28, %c0_i32_18 : i32
    scf.if %29 {
      %c0_19 = arith.constant 0 : index
      %c0_20 = arith.constant 0 : index
      %30 = vector.load %arg8[%c0_19, %c0_20] : memref<16x128xf32, #tpu.memory_space<vmem>>, vector<16x128xf32>
      %c0_21 = arith.constant 0 : index
      %c0_22 = arith.constant 0 : index
      %31 = vector.load %arg6[%c0_21, %c0_22] : memref<1x128xf32, #tpu.memory_space<vmem>>, vector<1x128xf32>
      %32 = vector.broadcast %31 : vector<1x128xf32> to vector<16x128xf32>
      %33 = arith.addf %30, %32 : vector<16x128xf32>
      %c0_23 = arith.constant 0 : index
      %c0_24 = arith.constant 0 : index
      %34 = vector.load %arg7[%c0_23, %c0_24] : memref<16x128xf32, #tpu.memory_space<vmem>>, vector<16x128xf32>
      tpu.vector_store %arg7[%c0_23, %c0_24], %33 {strides = array<i32>} : memref<16x128xf32, #tpu.memory_space<vmem>>, vector<16x128xf32>,
    } else {
    }
    return
  }
  func.func @transform_0(%arg0: i32, %arg1: i32) -> (i32, i32) {
    %c0_i32 = arith.constant 0 : i32
    %c0_i32_0 = arith.constant 0 : i32
    return %arg0, %c0_i32 : i32, i32
  }
  func.func @transform_1(%arg0: i32, %arg1: i32) -> (i32, i32) {
    %c0_i32 = arith.constant 0 : i32
    %c0_i32_0 = arith.constant 0 : i32
    return %c0_i32, %arg1 : i32, i32
  }
  func.func @transform_2(%arg0: i32, %arg1: i32) -> (i32, i32) {
    %c0_i32 = arith.constant 0 : i32
    %c0_i32_0 = arith.constant 0 : i32
    return %c0_i32, %arg1 : i32, i32
  }
  func.func @transform_3(%arg0: i32, %arg1: i32) -> (i32, i32) {
    %c0_i32 = arith.constant 0 : i32
    %c0_i32_0 = arith.constant 0 : i32
    return %arg1, %c0_i32 : i32, i32
  }
  func.func @transform_4(%arg0: i32, %arg1: i32) -> (i32, i32) {
    %c0_i32 = arith.constant 0 : i32
    %c0_i32_0 = arith.constant 0 : i32
    %c0_i32_1 = arith.constant 0 : i32
    return %c0_i32, %c0_i32_0 : i32, i32
  }
  func.func @transform_5(%arg0: i32, %arg1: i32) -> (i32, i32) {
    %c0_i32 = arith.constant 0 : i32
    %c0_i32_0 = arith.constant 0 : i32
    return %arg0, %c0_i32 : i32, i32
  }
}

</mosaic_0001>

<llo_original>
// kernel: feed_forward.1
$region0: #{feed_forward.1}
  #allocation0 [shape = 'u32[]', space=smem, size = 0x4, offset = 0x4, fixed_abs, tag = 'smem constant byte address 0x4 - core index']
  #allocation1 [shape = 'u32[144,128]{1,0:T(1,128)}', space=vmem, size = 0x12000, scoped, tag = 'internal scratch']
  #allocation2 [shape = 'f32[16,128]{1,0:T(8,128)}', space=vmem, size = 0x2000, scoped, tag = 'scratch operand']
  %s0 = inlined_call_operand.vmem [shape: f32[16,128], index: 0, kind: input, shape index: {}]
  %s1 = inlined_call_operand.vmem [shape: f32[128,128], index: 1, kind: input, shape index: {}]
  %s2 = inlined_call_operand.vmem [shape: f32[1,128], index: 2, kind: input, shape index: {}]
  %s3 = inlined_call_operand.vmem [shape: f32[128,128], index: 3, kind: input, shape index: {}]
  %s4 = inlined_call_operand.vmem [shape: f32[1,128], index: 4, kind: input, shape index: {}]
  %s5 = inlined_call_operand.vmem [shape: f32[16,128], index: 5, kind: output, shape index: {}]
  %s6 = sld [smem:[#allocation0]]
  $region38: #{feed_forward.1} parent=0
    _
  %s8 = ssub.s32 1, %s6
  %s9 = scalar_select 0, %s8, %s6
  // Predicated region
  $region2: #{feed_forward.1} parent=0 // pred_check
    _
  $region3: #{feed_forward.1} parent=0 // pred_check_branch
    %11 = sbr.rel (0) target = $region5
  $region4: #{feed_forward.1} parent=0 // pred_region
    _
  $region5: #{feed_forward.1} parent=0 // pred_fallthru
    _
  // Predicated region
  $region6: #{feed_forward.1} parent=0 // pred_check
    _
  $region7: #{feed_forward.1} parent=0 // pred_check_branch
    %13 = sbr.rel (0) target = $region9
  $region8: #{feed_forward.1} parent=0 // pred_region
    _
  $region9: #{feed_forward.1} parent=0 // pred_fallthru
    _
  // Predicated region
  $region10: #{feed_forward.1} parent=0 // pred_check
    _
  $region11: #{feed_forward.1} parent=0 // pred_check_branch
    %15 = sbr.rel (0) target = $region13
  $region12: #{feed_forward.1} parent=0 // pred_region
    _
  $region13: #{feed_forward.1} parent=0 // pred_fallthru
    _
  // Predicated region
  $region14: #{feed_forward.1} parent=0 // pred_check
    _
  $region15: #{feed_forward.1} parent=0 // pred_check_branch
    %17 = sbr.rel (0) target = $region17
  $region16: #{feed_forward.1} parent=0 // pred_region
    _
  $region17: #{feed_forward.1} parent=0 // pred_fallthru
    _
  // Predicated region
  $region18: #{feed_forward.1} parent=0 // pred_check
    _
  $region19: #{feed_forward.1} parent=0 // pred_check_branch
    %19 = sbr.rel (0) target = $region21
  $region20: #{feed_forward.1} parent=0 // pred_region
    _
  $region21: #{feed_forward.1} parent=0 // pred_fallthru
    _
  %p20 = scmp.eq.s32.totalorder 0, 0
  // Predicated region
  $region22: #{feed_forward.1} parent=0 // pred_check
    %p21 = pneg %p20
  $region23: #{feed_forward.1} parent=0 // pred_check_branch
    %23 = sbr.rel (%p21) target = $region25
  $region24: #{feed_forward.1} parent=0 // pred_region
    %24 = vst [vmem:[#allocation2] sm:$0xff] 0.0
    %25 = vst [vmem:[#allocation2 + $0x8] sm:$0xff] 0.0
  $region25: #{feed_forward.1} parent=0 // pred_fallthru
    _
  %v26 = vld [vmem:[%s0] sm:$0xff]
  %v27 = vld [vmem:[%s0 + $0x8] sm:$0xff]
  %v28 = vld [vmem:[%s1] sm:$0xff]
  %v29 = vld [vmem:[%s1 + $0x8] sm:$0xff]
  %v30 = vld [vmem:[%s1 + $0x10] sm:$0xff]
  %v31 = vld [vmem:[%s1 + $0x18] sm:$0xff]
  %v32 = vld [vmem:[%s1 + $0x20] sm:$0xff]
  %v33 = vld [vmem:[%s1 + $0x28] sm:$0xff]
  %v34 = vld [vmem:[%s1 + $0x30] sm:$0xff]
  %v35 = vld [vmem:[%s1 + $0x38] sm:$0xff]
  %v36 = vld [vmem:[%s1 + $0x40] sm:$0xff]
  %v37 = vld [vmem:[%s1 + $0x48] sm:$0xff]
  %v38 = vld [vmem:[%s1 + $0x50] sm:$0xff]
  %v39 = vld [vmem:[%s1 + $0x58] sm:$0xff]
  %v40 = vld [vmem:[%s1 + $0x60] sm:$0xff]
  %v41 = vld [vmem:[%s1 + $0x68] sm:$0xff]
  %v42 = vld [vmem:[%s1 + $0x70] sm:$0xff]
  %v43 = vld [vmem:[%s1 + $0x78] sm:$0xff]
  %v44 = vld [vmem:[%s2] sm:$0x1]
  %v46 = vlaneseq
  %v47 = vshrl.u32 %v46, 7
  %v48 = vsub.s32 0, %v47
  %v49 = vrot.slane %v44, %v48
  %51 = vmatprep.subr.mxu0 0.0
  %52 = vmatpush1.msra.mxu0 %v28
  %53 = vmatprep.subr.mxu0 0.0
  %54 = vmatpush1.msra.mxu0 %v29
  %55 = vmatprep.subr.mxu0 0.0
  %56 = vmatpush1.msra.mxu0 %v30
  %57 = vmatprep.subr.mxu0 0.0
  %58 = vmatpush1.msra.mxu0 %v31
  %59 = vmatprep.subr.mxu0 0.0
  %60 = vmatpush1.msra.mxu0 %v32
  %61 = vmatprep.subr.mxu0 0.0
  %62 = vmatpush1.msra.mxu0 %v33
  %63 = vmatprep.subr.mxu0 0.0
  %64 = vmatpush1.msra.mxu0 %v34
  %65 = vmatprep.subr.mxu0 0.0
  %66 = vmatpush1.msra.mxu0 %v35
  %67 = vmatprep.subr.mxu0 0.0
  %68 = vmatpush1.msra.mxu0 %v36
  %69 = vmatprep.subr.mxu0 0.0
  %70 = vmatpush1.msra.mxu0 %v37
  %71 = vmatprep.subr.mxu0 0.0
  %72 = vmatpush1.msra.mxu0 %v38
  %73 = vmatprep.subr.mxu0 0.0
  %74 = vmatpush1.msra.mxu0 %v39
  %75 = vmatprep.subr.mxu0 0.0
  %76 = vmatpush1.msra.mxu0 %v40
  %77 = vmatprep.subr.mxu0 0.0
  %78 = vmatpush1.msra.mxu0 %v41
  %79 = vmatprep.subr.mxu0 0.0
  %80 = vmatpush1.msra.mxu0 %v42
  %81 = vmatprep.subr.mxu0 0.0
  %82 = vmatpush1.msra.mxu0 %v43
  %83 = vmatprep.subr.mxu0 0.0
  %84 = vmatpush1.msra.mxu0 0.0
  %85 = vmatprep.subr.mxu0 0.0
  %86 = vmatpush1.msra.mxu0 0.0
  %87 = vmatprep.subr.mxu0 0.0
  %88 = vmatpush1.msra.mxu0 0.0
  %89 = vmatprep.subr.mxu0 0.0
  %90 = vmatpush1.msra.mxu0 0.0
  %91 = vmatprep.subr.mxu0 0.0
  %92 = vmatpush1.msra.mxu0 0.0
  %93 = vmatprep.subr.mxu0 0.0
  %94 = vmatpush1.msra.mxu0 0.0
  %95 = vmatprep.subr.mxu0 0.0
  %96 = vmatpush1.msra.mxu0 0.0
  %97 = vmatprep.subr.mxu0 0.0
  %98 = vmatpush1.msra.mxu0 0.0
  %99 = vmatprep.subr.mxu0 0.0
  %100 = vmatpush1.msra.mxu0 0.0
  %101 = vmatprep.subr.mxu0 0.0
  %102 = vmatpush1.msra.mxu0 0.0
  %103 = vmatprep.subr.mxu0 0.0
  %104 = vmatpush1.msra.mxu0 0.0
  %105 = vmatprep.subr.mxu0 0.0
  %106 = vmatpush1.msra.mxu0 0.0
  %107 = vmatprep.subr.mxu0 0.0
  %108 = vmatpush1.msra.mxu0 0.0
  %109 = vmatprep.subr.mxu0 0.0
  %110 = vmatpush1.msra.mxu0 0.0
  %111 = vmatprep.subr.mxu0 0.0
  %112 = vmatpush1.msra.mxu0 0.0
  %113 = vmatprep.subr.mxu0 0.0
  %114 = vmatpush1.msra.mxu0 0.0
  %115 = vmatprep.mubr.f32.mxu0 0.0
  %116 = vmatmul.mubr.f32.gmra.mrb[0].mxu0 %v26
  %v117 = vpop.f32.mrb[0].mxu0
  %v118 = vadd.f32 %v49, %v117
  %v119 = vpop.f32.mrb[0].mxu0
  %120 = vmatprep.mubr.f32.mxu0 0.0
  %121 = vmatmul.mubr.f32.gmra.mrb[0].mxu0 %v27
  %v122 = vpop.f32.mrb[0].mxu0
  %v123 = vadd.f32 %v49, %v122
  %v124 = vpop.f32.mrb[0].mxu0
  %125 = vdwg.mxu0
  %v126 = vmul.f32 %v118, %v118
  %v127 = vmul.f32 %v123, %v123
  %v128 = vmul.f32 %v118, %v126
  %v129 = vmul.f32 %v123, %v127
  %v130 = vmul.f32 %v128, 0.044715
  %v131 = vmul.f32 %v129, 0.044715
  %v132 = vadd.f32 %v118, %v130
  %v133 = vadd.f32 %v123, %v131
  %v134 = vmul.f32 %v132, 0.7978846
  %v135 = vmul.f32 %v133, 0.7978846
  %v136 = vtanh.pop %v134
  %v137 = vtanh.pop %v135
  %v138 = vadd.f32 %v136, 1.0
  %v139 = vadd.f32 %v137, 1.0
  %v140 = vmul.f32 %v138, 0.5
  %v141 = vmul.f32 %v139, 0.5
  %v142 = vmul.f32 %v118, %v140
  %v143 = vmul.f32 %v123, %v141
  %v144 = vld [vmem:[#allocation2] sm:$0xff]
  %v145 = vld [vmem:[#allocation2 + $0x8] sm:$0xff]
  %v146 = vld [vmem:[%s3] sm:$0xff]
  %v147 = vld [vmem:[%s3 + $0x8] sm:$0xff]
  %v148 = vld [vmem:[%s3 + $0x10] sm:$0xff]
  %v149 = vld [vmem:[%s3 + $0x18] sm:$0xff]
  %v150 = vld [vmem:[%s3 + $0x20] sm:$0xff]
  %v151 = vld [vmem:[%s3 + $0x28] sm:$0xff]
  %v152 = vld [vmem:[%s3 + $0x30] sm:$0xff]
  %v153 = vld [vmem:[%s3 + $0x38] sm:$0xff]
  %v154 = vld [vmem:[%s3 + $0x40] sm:$0xff]
  %v155 = vld [vmem:[%s3 + $0x48] sm:$0xff]
  %v156 = vld [vmem:[%s3 + $0x50] sm:$0xff]
  %v157 = vld [vmem:[%s3 + $0x58] sm:$0xff]
  %v158 = vld [vmem:[%s3 + $0x60] sm:$0xff]
  %v159 = vld [vmem:[%s3 + $0x68] sm:$0xff]
  %v160 = vld [vmem:[%s3 + $0x70] sm:$0xff]
  %v161 = vld [vmem:[%s3 + $0x78] sm:$0xff]
  %162 = vmatprep.subr.mxu0 0.0
  %163 = vmatpush1.msra.mxu0 %v146
  %164 = vmatprep.subr.mxu0 0.0
  %165 = vmatpush1.msra.mxu0 %v147
  %166 = vmatprep.subr.mxu0 0.0
  %167 = vmatpush1.msra.mxu0 %v148
  %168 = vmatprep.subr.mxu0 0.0
  %169 = vmatpush1.msra.mxu0 %v149
  %170 = vmatprep.subr.mxu0 0.0
  %171 = vmatpush1.msra.mxu0 %v150
  %172 = vmatprep.subr.mxu0 0.0
  %173 = vmatpush1.msra.mxu0 %v151
  %174 = vmatprep.subr.mxu0 0.0
  %175 = vmatpush1.msra.mxu0 %v152
  %176 = vmatprep.subr.mxu0 0.0
  %177 = vmatpush1.msra.mxu0 %v153
  %178 = vmatprep.subr.mxu0 0.0
  %179 = vmatpush1.msra.mxu0 %v154
  %180 = vmatprep.subr.mxu0 0.0
  %181 = vmatpush1.msra.mxu0 %v155
  %182 = vmatprep.subr.mxu0 0.0
  %183 = vmatpush1.msra.mxu0 %v156
  %184 = vmatprep.subr.mxu0 0.0
  %185 = vmatpush1.msra.mxu0 %v157
  %186 = vmatprep.subr.mxu0 0.0
  %187 = vmatpush1.msra.mxu0 %v158
  %188 = vmatprep.subr.mxu0 0.0
  %189 = vmatpush1.msra.mxu0 %v159
  %190 = vmatprep.subr.mxu0 0.0
  %191 = vmatpush1.msra.mxu0 %v160
  %192 = vmatprep.subr.mxu0 0.0
  %193 = vmatpush1.msra.mxu0 %v161
  %194 = vmatprep.subr.mxu0 0.0
  %195 = vmatpush1.msra.mxu0 0.0
  %196 = vmatprep.subr.mxu0 0.0
  %197 = vmatpush1.msra.mxu0 0.0
  %198 = vmatprep.subr.mxu0 0.0
  %199 = vmatpush1.msra.mxu0 0.0
  %200 = vmatprep.subr.mxu0 0.0
  %201 = vmatpush1.msra.mxu0 0.0
  %202 = vmatprep.subr.mxu0 0.0
  %203 = vmatpush1.msra.mxu0 0.0
  %204 = vmatprep.subr.mxu0 0.0
  %205 = vmatpush1.msra.mxu0 0.0
  %206 = vmatprep.subr.mxu0 0.0
  %207 = vmatpush1.msra.mxu0 0.0
  %208 = vmatprep.subr.mxu0 0.0
  %209 = vmatpush1.msra.mxu0 0.0
  %210 = vmatprep.subr.mxu0 0.0
  %211 = vmatpush1.msra.mxu0 0.0
  %212 = vmatprep.subr.mxu0 0.0
  %213 = vmatpush1.msra.mxu0 0.0
  %214 = vmatprep.subr.mxu0 0.0
  %215 = vmatpush1.msra.mxu0 0.0
  %216 = vmatprep.subr.mxu0 0.0
  %217 = vmatpush1.msra.mxu0 0.0
  %218 = vmatprep.subr.mxu0 0.0
  %219 = vmatpush1.msra.mxu0 0.0
  %220 = vmatprep.subr.mxu0 0.0
  %221 = vmatpush1.msra.mxu0 0.0
  %222 = vmatprep.subr.mxu0 0.0
  %223 = vmatpush1.msra.mxu0 0.0
  %224 = vmatprep.subr.mxu0 0.0
  %225 = vmatpush1.msra.mxu0 0.0
  %226 = vmatprep.mubr.f32.mxu0 0.0
  %227 = vmatmul.mubr.f32.gmra.mrb[0].mxu0 %v142
  %v228 = vpop.f32.mrb[0].mxu0
  %v229 = vadd.f32 0.0, %v228
  %v230 = vpop.f32.mrb[0].mxu0
  %231 = vmatprep.mubr.f32.mxu0 0.0
  %232 = vmatmul.mubr.f32.gmra.mrb[0].mxu0 %v143
  %v233 = vpop.f32.mrb[0].mxu0
  %v234 = vadd.f32 0.0, %v233
  %v235 = vpop.f32.mrb[0].mxu0
  %236 = vdwg.mxu0
  %v237 = vadd.f32 %v144, %v229
  %v238 = vadd.f32 %v145, %v234
  %239 = vst [vmem:[#allocation2] sm:$0xff] %v237
  %240 = vst [vmem:[#allocation2 + $0x8] sm:$0xff] %v238
  // Predicated region
  $region26: #{feed_forward.1} parent=0 // pred_check
    %p241 = pneg %p20
  $region27: #{feed_forward.1} parent=0 // pred_check_branch
    %243 = sbr.rel (%p241) target = $region29
  $region28: #{feed_forward.1} parent=0 // pred_region
    %v244 = vld [vmem:[#allocation2] sm:$0xff]
    %v245 = vld [vmem:[#allocation2 + $0x8] sm:$0xff]
    %v246 = vld [vmem:[%s4] sm:$0x1]
    %v248 = vlaneseq
    %v249 = vshrl.u32 %v248, 7
    %v250 = vsub.s32 0, %v249
    %v251 = vrot.slane %v246, %v250
    %v253 = vadd.f32 %v244, %v251
    %v254 = vadd.f32 %v245, %v251
    %255 = vst [vmem:[%s5] sm:$0xff] %v253
    %256 = vst [vmem:[%s5 + $0x8] sm:$0xff] %v254
  $region29: #{feed_forward.1} parent=0 // pred_fallthru
    _
  // Predicated region
  $region30: #{feed_forward.1} parent=0 // pred_check
    _
  $region31: #{feed_forward.1} parent=0 // pred_check_branch
    %258 = sbr.rel (0) target = $region33
  $region32: #{feed_forward.1} parent=0 // pred_region
    _
  $region33: #{feed_forward.1} parent=0 // pred_fallthru
    _
  // Predicated region
  $region34: #{feed_forward.1} parent=0 // pred_check
    _
  $region35: #{feed_forward.1} parent=0 // pred_check_branch
    %260 = sbr.rel (0) target = $region37
  $region36: #{feed_forward.1} parent=0 // pred_region
    _
  $region37: #{feed_forward.1} parent=0 // pred_fallthru
    _

</llo_original>
